<compile_context>
chip_gen: v5e
topology: v5e:2x2
jax: 0.10.0
libtpu: 0.0.40
codegen_flags: <defaults>
</compile_context>

<pallas_src>
import jax
import jax.numpy as jnp
from jax.experimental import pallas as pl
from jax.experimental.pallas import tpu as pltpu


# ---------------------------------------------------------------------------
# Pallas kernel: lane-dense tiled copy (identity).
# ---------------------------------------------------------------------------
def _copy_kernel(x_ref, o_ref):
    o_ref[...] = x_ref[...]


def _choose_row_tile(rows):
    """Largest row tile in the measured sweet spot that evenly divides rows."""
    for t in (2048, 1024, 512, 256, 128, 64, 32, 16, 8):
        if rows % t == 0:
            return t
    return None  # rows not a multiple of 8 -> use a single full-array block


def _pallas_identity_copy(x):
    """Identity implemented as a lane-dense Pallas copy kernel."""
    total = x.size
    if total % 128 == 0:
        rows = total // 128
        x2 = x.reshape(rows, 128)  # last dim = 128 lanes -> unmasked stores
        tile_rows = _choose_row_tile(rows)
        if tile_rows is None:
            # Block equal to the full array dims is always legal.
            tile_rows = rows
        grid = (rows // tile_rows,)
        out = pl.pallas_call(
            _copy_kernel,
            out_shape=jax.ShapeDtypeStruct((rows, 128), x.dtype),
            grid_spec=pl.GridSpec(
                grid=grid,
                in_specs=[pl.BlockSpec((tile_rows, 128), lambda r: (r, 0))],
                out_specs=pl.BlockSpec((tile_rows, 128), lambda r: (r, 0)),
            ),
            compiler_params=pltpu.CompilerParams(
                dimension_semantics=("parallel",)),
        )(x2)
        return out.reshape(x.shape)

    # Fallback for odd element counts: one full-array block (still legal
    # because the block equals the full array dims).
    return pl.pallas_call(
        _copy_kernel,
        out_shape=jax.ShapeDtypeStruct(x.shape, x.dtype),
    )(x)


# ---------------------------------------------------------------------------
# Forward pass (matches EncoderBlock.forward semantics exactly).
# ---------------------------------------------------------------------------
def encoder_block_forward(inputs, states=None, return_state=False,
                          training=False, *, use_pallas_copy=False):
    """EncoderBlock.forward: identity.

    Default path returns `inputs` directly — zero DMAs, zero grid overhead —
    which is the faithful (and fastest possible) implementation of the
    reference forward.  Set use_pallas_copy=True to route through the
    lane-dense Pallas copy kernel instead.
    """
    # TODO(synk): if the real attention + FFN body is ever added upstream,
    # replace the identity with MXU-driven (tm, tk)x(tk, tn) tiles (reduction
    # axis last, f32 VMEM accumulator, bf16 inputs + preferred_element_type).
    if use_pallas_copy:
        return _pallas_identity_copy(inputs)
    return inputs


if __name__ == "__main__":
    key = jax.random.PRNGKey(0)

    # Small shapes consistent with a transformer encoder block input.
    B, S, D = 2, 8, 32  # batch, seq, d_model
    x = jax.random.normal(key, (B, S, D), dtype=jnp.float32)

    # Default (recommended) path: pure identity, no kernel launch.
    out_fast = encoder_block_forward(x)
    assert out_fast is x  # literally zero-cost pass-through

    # Explicit Pallas kernel path: lane-dense tiled copy, verified exact.
    out_pallas = encoder_block_forward(x, use_pallas_copy=True)
    out_pallas = jax.block_until_ready(out_pallas)

    assert out_pallas.shape == x.shape and out_pallas.dtype == x.dtype
    assert bool(jnp.all(out_pallas == x))

    print("KERNEL_OK")
</pallas_src>

<mosaic_0001>
module attributes {stable_mosaic.version = 11 : i64} {
  func.func @_copy_kernel(%arg0: i32, %arg1: memref<4x128xf32, #tpu.memory_space<vmem>>, %arg2: memref<4x128xf32, #tpu.memory_space<vmem>>) attributes {dimension_semantics = [#tpu.dimension_semantics<parallel>], iteration_bounds = array<i64: 1>, scalar_prefetch = 0 : i64, scratch_operands = 0 : i64, tpu.core_type = #tpu.core_type<tc>, window_params = [{transform_indices = @transform_0, window_bounds = array<i64: 4, 128>}, {transform_indices = @transform_1, window_bounds = array<i64: 4, 128>}]} {
    %c0 = arith.constant 0 : index
    %c0_0 = arith.constant 0 : index
    %0 = vector.load %arg1[%c0, %c0_0] : memref<4x128xf32, #tpu.memory_space<vmem>>, vector<4x128xf32>
    %c0_1 = arith.constant 0 : index
    %c0_2 = arith.constant 0 : index
    %1 = vector.load %arg2[%c0_1, %c0_2] : memref<4x128xf32, #tpu.memory_space<vmem>>, vector<4x128xf32>
    tpu.vector_store %arg2[%c0_1, %c0_2], %0 {strides = array<i32>} : memref<4x128xf32, #tpu.memory_space<vmem>>, vector<4x128xf32>,
    return
  }
  func.func @transform_0(%arg0: i32) -> (i32, i32) {
    %c0_i32 = arith.constant 0 : i32
    %c0_i32_0 = arith.constant 0 : i32
    return %arg0, %c0_i32 : i32, i32
  }
  func.func @transform_1(%arg0: i32) -> (i32, i32) {
    %c0_i32 = arith.constant 0 : i32
    %c0_i32_0 = arith.constant 0 : i32
    return %arg0, %c0_i32 : i32, i32
  }
}

</mosaic_0001>

<llo_original>
// kernel: tpu_custom_call.1
$region0: #{tpu_custom_call.1}
  #allocation0 [shape = 'u32[]', space=smem, size = 0x4, offset = 0x4, fixed_abs, tag = 'smem constant byte address 0x4 - core index']
  #allocation1 [shape = 'u32[72,128]{1,0:T(1,128)}', space=vmem, size = 0x9000, scoped, tag = 'internal scratch']
  %s0 = inlined_call_operand.hbm [shape: f32[4,128], index: 0, kind: input, shape index: {}]
  %s1 = inlined_call_operand.hbm [shape: f32[4,128], index: 1, kind: output, shape index: {}]
  %s2 = sld [smem:[#allocation0]]
  $region18: #{tpu_custom_call.1} parent=0
    _
  %s4 = ssub.s32 1, %s2
  %s5 = scalar_select 0, %s4, %s2
  $region1: #{tpu_custom_call.1} parent=0
    #allocation2 [shape = 'u8[2048]{0}', space=vmem, size = 0x800, scoped, tag = 'input window, operand 0, single buffered']
    #allocation3 [shape = 's32[1]{0}', space=sflag, size = 0x4, scoped, tag = 'scoped memory for tpu_custom_call.1']
    #allocation4 [shape = 's32[1]{0}', space=sflag, size = 0x4, scoped, tag = 'scoped memory for tpu_custom_call.1']
    #allocation5 [shape = 'u8[2048]{0}', space=vmem, size = 0x800, scoped, tag = 'output window, operand 0, single buffered']
    %6 = vsyncpa [#allocation3], 0
    %7 = vsyncpa [#allocation4], 0
    // Predicated region
    $region2: #{tpu_custom_call.1} parent=1 // pred_check
      _
    $region3: #{tpu_custom_call.1} parent=1 // pred_check_branch
      %9 = sbr.rel (0) target = $region5
    $region4: #{tpu_custom_call.1} parent=1 // pred_region
      %11 = vsyncadd [#allocation3], 0
      %s13 = sshll.u32 %s0, 4
      %s14 = int_to_ptr.hbm [resolvable:$true] %s13
      %s15 = sshll.u32 [#allocation2], 4
      %s16 = int_to_ptr.vmem [resolvable:$true] %s15
      %18 = dma.hbm_to_vmem [thread:$0]  %s14, 64, %s16, [#allocation3]
    $region5: #{tpu_custom_call.1} parent=1 // pred_fallthru
      _
    // Predicated region
    $region6: #{tpu_custom_call.1} parent=1 // pred_check
      _
    $region7: #{tpu_custom_call.1} parent=1 // pred_check_branch
      %20 = sbr.rel (0) target = $region9
    $region8: #{tpu_custom_call.1} parent=1 // pred_region
      %22 = dma.done [#allocation3], 64
    $region9: #{tpu_custom_call.1} parent=1 // pred_fallthru
      _
    %v23 = vld [vmem:[#allocation2] sm:$0xf]
    %24 = vst [vmem:[#allocation5] sm:$0xf] %v23
    // Predicated region
    $region10: #{tpu_custom_call.1} parent=1 // pred_check
      _
    $region11: #{tpu_custom_call.1} parent=1 // pred_check_branch
      %26 = sbr.rel (0) target = $region13
    $region12: #{tpu_custom_call.1} parent=1 // pred_region
      %28 = vsyncadd [#allocation4], 0
      %s30 = sshll.u32 [#allocation5], 4
      %s31 = int_to_ptr.vmem [resolvable:$true] %s30
      %s32 = sshll.u32 %s1, 4
      %s33 = int_to_ptr.hbm [resolvable:$true] %s32
      %35 = dma.vmem_to_hbm [thread:$0]  %s31, 64, %s33, [#allocation4]
    $region13: #{tpu_custom_call.1} parent=1 // pred_fallthru
      _
    // Predicated region
    $region14: #{tpu_custom_call.1} parent=1 // pred_check
      _
    $region15: #{tpu_custom_call.1} parent=1 // pred_check_branch
      %37 = sbr.rel (0) target = $region17
    $region16: #{tpu_custom_call.1} parent=1 // pred_region
      %39 = dma.done [#allocation4], 64
    $region17: #{tpu_custom_call.1} parent=1 // pred_fallthru
      _
    %40 = vsyncpa [#allocation3], 1
    %41 = vsyncpa [#allocation4], 1

</llo_original>
